<compile_context>
chip_gen: v6e
topology: v6e:2x2x1
jax: 0.10.0
libtpu: 0.0.40
codegen_flags: <defaults>
</compile_context>

<pallas_src>
import math

import jax
import jax.numpy as jnp
from jax.experimental import pallas as pl
from jax.experimental.pallas import tpu as pltpu


def make_gaussian_weight(channels, kernel_size, sigma, dim=2):
    """Reproduces GaussianSmoothing.__init__ weight construction exactly (reference only)."""
    if isinstance(kernel_size, (int, float)):
        kernel_size = [int(kernel_size)] * dim
    if isinstance(sigma, (int, float)):
        sigma = [float(sigma)] * dim
    grids = jnp.meshgrid(
        *[jnp.arange(s, dtype=jnp.float32) for s in kernel_size], indexing="ij"
    )
    kernel = jnp.ones((), jnp.float32)
    for size, std, mgrid in zip(kernel_size, sigma, grids):
        mean = (size - 1) / 2.0
        # NOTE: faithful to the PyTorch code: exp(-((x - mean) / (2*std))**2)
        kernel = kernel * (
            1.0 / (std * math.sqrt(2.0 * math.pi))
            * jnp.exp(-(((mgrid - mean) / (2.0 * std)) ** 2))
        )
    kernel = kernel / jnp.sum(kernel)
    kernel = kernel.reshape((1, 1) + kernel.shape)           # (1, 1, K, K)
    kernel = jnp.tile(kernel, (channels,) + (1,) * (kernel.ndim - 1))
    return kernel                                            # (C, 1, K, K)


def _gaussian_taps_1d(size, std):
    """1-D taps matching the PyTorch construction (quirky 2*std in the exponent),
    normalized.  Pure Python floats so they fold into the kernel as immediates.
    The outer product of the normalized 1-D taps equals the module's normalized
    2-D kernel exactly."""
    mean = (size - 1) / 2.0
    taps = [
        (1.0 / (std * math.sqrt(2.0 * math.pi)))
        * math.exp(-(((t - mean) / (2.0 * std)) ** 2))
        for t in range(size)
    ]
    s = sum(taps)
    return [t / s for t in taps]


def gaussian_smoothing_2d(x, kernel_size, sigma, dim=2):
    """x: (N, C, H, W). Depthwise 'valid' Gaussian blur == GaussianSmoothing.forward."""
    assert dim == 2, "only the default dim=2 forward path is implemented"
    if isinstance(kernel_size, (int, float)):
        kernel_size = [int(kernel_size)] * dim
    if isinstance(sigma, (int, float)):
        sigma = [float(sigma)] * dim
    Kh, Kw = int(kernel_size[0]), int(kernel_size[1])
    wh = _gaussian_taps_1d(Kh, float(sigma[0]))   # vertical taps (H axis)
    ww = _gaussian_taps_1d(Kw, float(sigma[1]))   # horizontal taps (W axis)

    N, C, H, W = x.shape
    Ho, Wo = H - Kh + 1, W - Kw + 1
    NC = N * C
    L = NC * W                                    # folded lane extent
    # Pad the lane axis by Kw-1 (rounded up to a full 128-lane tile) so every
    # horizontal tap is a full-L-width slice; padded lanes only feed output
    # columns that are discarded during unfolding.
    Lp = ((L + (Kw - 1) + 127) // 128) * 128

    # Lane-dense fold: (N, C, H, W) -> (H, NC*W), then zero-pad lanes to Lp.
    x_fold = jnp.transpose(x.reshape(NC, H, W), (1, 0, 2)).reshape(H, L)
    x_fold = jnp.pad(x_fold, ((0, 0), (0, Lp - L)))

    def kernel(x_ref, o_ref):
        img = x_ref[...].astype(jnp.float32)             # (H, Lp)
        # Horizontal (W) pass: Kw shifted full-width lane slices, baked weights.
        acc_w = ww[0] * img[:, 0:L]
        for j in range(1, Kw):
            acc_w = acc_w + ww[j] * img[:, j:j + L]      # (H, L)
        # Vertical (H) pass: Kh shifted sublane slices.
        acc = wh[0] * acc_w[0:Ho, :]
        for i in range(1, Kh):
            acc = acc + wh[i] * acc_w[i:i + Ho, :]       # (Ho, L)
        o_ref[...] = acc.astype(o_ref.dtype)

    out_f = pl.pallas_call(
        kernel,
        out_shape=jax.ShapeDtypeStruct((Ho, L), x.dtype),
        grid=(1,),
        in_specs=[pl.BlockSpec((H, Lp), lambda i: (0, 0))],
        out_specs=pl.BlockSpec((Ho, L), lambda i: (0, 0)),
        compiler_params=pltpu.CompilerParams(
            dimension_semantics=("arbitrary",)
        ),
    )(x_fold)

    # Unfold: (Ho, NC*W) -> (N, C, Ho, Wo); the Kw-1 trailing columns of each
    # per-image lane segment are invalid and dropped here.
    out = out_f.reshape(Ho, NC, W)[:, :, :Wo]
    out = jnp.transpose(out, (1, 0, 2)).reshape(N, C, Ho, Wo)
    return out


if __name__ == "__main__":
    channels, kernel_size, sigma = 4, 3, 1.0
    N, C, H, W = 2, channels, 16, 16

    key = jax.random.PRNGKey(0)
    x = jax.random.normal(key, (N, C, H, W), dtype=jnp.float32)

    out = gaussian_smoothing_2d(x, kernel_size, sigma)
    out = jax.block_until_ready(out)

    # Reference: depthwise valid conv via XLA, using the faithful PyTorch weight.
    weight = make_gaussian_weight(channels, kernel_size, sigma, dim=2)
    ref = jax.lax.conv_general_dilated(
        x, weight,
        window_strides=(1, 1),
        padding="VALID",
        dimension_numbers=("NCHW", "OIHW", "NCHW"),
        feature_group_count=channels,
    )
    assert out.shape == (N, C, H - kernel_size + 1, W - kernel_size + 1)
    assert jnp.allclose(out, ref, atol=1e-5, rtol=1e-5), float(
        jnp.max(jnp.abs(out - ref))
    )

    print("KERNEL_OK")
</pallas_src>

<mosaic_0001>
module attributes {stable_mosaic.version = 11 : i64} {
  func.func @kernel(%arg0: i32, %arg1: memref<16x256xf32, #tpu.memory_space<vmem>>, %arg2: memref<14x128xf32, #tpu.memory_space<vmem>>) attributes {dimension_semantics = [#tpu.dimension_semantics<arbitrary>], iteration_bounds = array<i64: 1>, scalar_prefetch = 0 : i64, scratch_operands = 0 : i64, tpu.core_type = #tpu.core_type<tc>, window_params = [{pipeline_mode = #tpu.pipeline_mode<synchronous>, transform_indices = @transform_0, window_bounds = array<i64: 16, 256>}, {pipeline_mode = #tpu.pipeline_mode<synchronous>, transform_indices = @transform_1, window_bounds = array<i64: 14, 128>}]} {
    %c0 = arith.constant 0 : index
    %c0_0 = arith.constant 0 : index
    %0 = vector.load %arg1[%c0, %c0_0] : memref<16x256xf32, #tpu.memory_space<vmem>>, vector<16x256xf32>
    %1 = vector.extract_strided_slice %0 {offsets = [0, 0], sizes = [16, 128], strides = [1, 1]} : vector<16x256xf32> to vector<16x128xf32>
    %cst = arith.constant 0.304504335 : f32
    %2 = vector.broadcast %cst : f32 to vector<16x128xf32>
    %3 = arith.mulf %2, %1 : vector<16x128xf32>
    %4 = vector.extract_strided_slice %0 {offsets = [0, 1], sizes = [16, 128], strides = [1, 1]} : vector<16x256xf32> to vector<16x128xf32>
    %cst_1 = arith.constant 0.3909913 : f32
    %5 = vector.broadcast %cst_1 : f32 to vector<16x128xf32>
    %6 = arith.mulf %5, %4 : vector<16x128xf32>
    %7 = arith.addf %3, %6 : vector<16x128xf32>
    %8 = vector.extract_strided_slice %0 {offsets = [0, 2], sizes = [16, 128], strides = [1, 1]} : vector<16x256xf32> to vector<16x128xf32>
    %cst_2 = arith.constant 0.304504335 : f32
    %9 = vector.broadcast %cst_2 : f32 to vector<16x128xf32>
    %10 = arith.mulf %9, %8 : vector<16x128xf32>
    %11 = arith.addf %7, %10 : vector<16x128xf32>
    %12 = vector.extract_strided_slice %11 {offsets = [0, 0], sizes = [14, 128], strides = [1, 1]} : vector<16x128xf32> to vector<14x128xf32>
    %cst_3 = arith.constant 0.304504335 : f32
    %13 = vector.broadcast %cst_3 : f32 to vector<14x128xf32>
    %14 = arith.mulf %13, %12 : vector<14x128xf32>
    %15 = vector.extract_strided_slice %11 {offsets = [1, 0], sizes = [14, 128], strides = [1, 1]} : vector<16x128xf32> to vector<14x128xf32>
    %cst_4 = arith.constant 0.3909913 : f32
    %16 = vector.broadcast %cst_4 : f32 to vector<14x128xf32>
    %17 = arith.mulf %16, %15 : vector<14x128xf32>
    %18 = arith.addf %14, %17 : vector<14x128xf32>
    %19 = vector.extract_strided_slice %11 {offsets = [2, 0], sizes = [14, 128], strides = [1, 1]} : vector<16x128xf32> to vector<14x128xf32>
    %cst_5 = arith.constant 0.304504335 : f32
    %20 = vector.broadcast %cst_5 : f32 to vector<14x128xf32>
    %21 = arith.mulf %20, %19 : vector<14x128xf32>
    %22 = arith.addf %18, %21 : vector<14x128xf32>
    %c0_6 = arith.constant 0 : index
    %c0_7 = arith.constant 0 : index
    %23 = vector.load %arg2[%c0_6, %c0_7] : memref<14x128xf32, #tpu.memory_space<vmem>>, vector<14x128xf32>
    tpu.vector_store %arg2[%c0_6, %c0_7], %22 {strides = array<i32>} : memref<14x128xf32, #tpu.memory_space<vmem>>, vector<14x128xf32>,
    return
  }
  func.func @transform_0(%arg0: i32) -> (i32, i32) {
    %c0_i32 = arith.constant 0 : i32
    %c0_i32_0 = arith.constant 0 : i32
    %c0_i32_1 = arith.constant 0 : i32
    return %c0_i32, %c0_i32_0 : i32, i32
  }
  func.func @transform_1(%arg0: i32) -> (i32, i32) {
    %c0_i32 = arith.constant 0 : i32
    %c0_i32_0 = arith.constant 0 : i32
    %c0_i32_1 = arith.constant 0 : i32
    return %c0_i32, %c0_i32_0 : i32, i32
  }
}

</mosaic_0001>

<llo_original>
// kernel: tpu_custom_call.1
$region0: #{tpu_custom_call.1}
  #allocation0 [shape = 'u32[]', space=smem, size = 0x4, offset = 0x4, fixed_abs, tag = 'smem constant byte address 0x4 - core index']
  #allocation1 [shape = 'u32[144,128]{1,0:T(1,128)}', space=vmem, size = 0x12000, scoped, tag = 'internal scratch']
  %s0 = inlined_call_operand.hbm [shape: f32[16,256], index: 0, kind: input, shape index: {}]
  %s1 = inlined_call_operand.hbm [shape: f32[14,128], index: 1, kind: output, shape index: {}]
  %s2 = sld [smem:[#allocation0]]
  $region18: #{tpu_custom_call.1} parent=0
    _
  %s4 = ssub.s32 1, %s2
  %s5 = scalar_select 0, %s4, %s2
  $region1: #{tpu_custom_call.1} parent=0
    #allocation2 [shape = 'u8[16384]{0}', space=vmem, size = 0x4000, scoped, tag = 'input window, operand 0, single buffered']
    #allocation3 [shape = 's32[1]{0}', space=sflag, size = 0x4, scoped, tag = 'scoped memory for tpu_custom_call.1']
    #allocation4 [shape = 's32[1]{0}', space=sflag, size = 0x4, scoped, tag = 'scoped memory for tpu_custom_call.1']
    #allocation5 [shape = 'u8[8192]{0}', space=vmem, size = 0x2000, scoped, tag = 'output window, operand 0, single buffered']
    %6 = vsyncpa [#allocation3], 0
    %7 = vsyncpa [#allocation4], 0
    // Predicated region
    $region2: #{tpu_custom_call.1} parent=1 // pred_check
      _
    $region3: #{tpu_custom_call.1} parent=1 // pred_check_branch
      %9 = sbr.rel (0) target = $region5
    $region4: #{tpu_custom_call.1} parent=1 // pred_region
      %s11 = ssub.s32 512, 512
      %12 = vsyncadd [#allocation3], %s11
      %s13 = sshll.u32 [#allocation2], 4
      %s14 = int_to_ptr.vmem [resolvable:$true] %s13
      %19 = dma.hbm_to_vmem [thread:$0]  %s0, 512, %s14, [#allocation3], 256, 256, 16
    $region5: #{tpu_custom_call.1} parent=1 // pred_fallthru
      _
    // Predicated region
    $region6: #{tpu_custom_call.1} parent=1 // pred_check
      _
    $region7: #{tpu_custom_call.1} parent=1 // pred_check_branch
      %21 = sbr.rel (0) target = $region9
    $region8: #{tpu_custom_call.1} parent=1 // pred_region
      %22 = dma.done [#allocation3], 512
    $region9: #{tpu_custom_call.1} parent=1 // pred_fallthru
      _
    %v23 = vld [vmem:[#allocation2] sm:$0xff]
    %v24 = vld [vmem:[#allocation2 + $0x8] sm:$0xff]
    %v25 = vld [vmem:[#allocation2 + $0x10] sm:$0xff]
    %v26 = vld [vmem:[#allocation2 + $0x18] sm:$0xff]
    %v27 = vmul.f32 %v23, 0.30450433
    %v28 = vmul.f32 %v25, 0.30450433
    %v29 = vmul.f32 %v23, 0.3909913
    %v30 = vmul.f32 %v24, 0.3909913
    %v31 = vmul.f32 %v25, 0.3909913
    %v32 = vmul.f32 %v26, 0.3909913
    %37 = vrot.lane.b32.xlu0 %v29, 127
    %v38 = vpop.permute.xlu0 %37
    %39 = vrot.lane.b32.xlu0 %v30, 127
    %v40 = vpop.permute.xlu0 %39
    %41 = vrot.lane.b32.xlu0 %v31, 127
    %v42 = vpop.permute.xlu0 %41
    %43 = vrot.lane.b32.xlu0 %v32, 127
    %v44 = vpop.permute.xlu0 %43
    %vm45 = vcmask 1039360
    %v46 = vsel %vm45, %v38, %v40
    %v47 = vsel %vm45, %v42, %v44
    %v50 = vadd.f32 %v27, %v46
    %v51 = vadd.f32 %v28, %v47
    %v52 = vmul.f32 %v24, 0.30450433
    %v53 = vmul.f32 %v26, 0.30450433
    %58 = vrot.lane.b32.xlu0 %v27, 126
    %v59 = vpop.permute.xlu0 %58
    %60 = vrot.lane.b32.xlu0 %v52, 126
    %v61 = vpop.permute.xlu0 %60
    %62 = vrot.lane.b32.xlu0 %v28, 126
    %v63 = vpop.permute.xlu0 %62
    %64 = vrot.lane.b32.xlu0 %v53, 126
    %v65 = vpop.permute.xlu0 %64
    %vm66 = vcmask 1031168
    %v67 = vsel %vm66, %v59, %v61
    %v68 = vsel %vm66, %v63, %v65
    %v71 = vadd.f32 %v50, %v67
    %v72 = vadd.f32 %v51, %v68
    %v73 = vmul.f32 %v71, 0.30450433
    %v74 = vmul.f32 %v72, 0.30450433
    %v75 = vmul.f32 %v71, 0.3909913
    %v76 = vmul.f32 %v72, 0.3909913
    %vm79 = vcmask 1046528
    %v80 = vrot.slane %v75, 1
    %v81 = vrot.slane %v76, 1
    %v82 = vsel %vm79, %v80, %v81
    %v85 = vadd.f32 %v73, %v82
    %v86 = vadd.f32 %v74, %v81
    %vm89 = vcmask 1045504
    %v90 = vrot.slane %v73, 2
    %v91 = vrot.slane %v74, 2
    %v92 = vsel %vm89, %v90, %v91
    %v95 = vadd.f32 %v85, %v92
    %v96 = vadd.f32 %v86, %v91
    %97 = vst [vmem:[#allocation5] sm:$0xff] %v95
    %98 = vst [vmem:[#allocation5 + $0x8] sm:$0x3f] %v96
    // Predicated region
    $region10: #{tpu_custom_call.1} parent=1 // pred_check
      _
    $region11: #{tpu_custom_call.1} parent=1 // pred_check_branch
      %100 = sbr.rel (0) target = $region13
    $region12: #{tpu_custom_call.1} parent=1 // pred_region
      %s102 = ssub.s32 256, 256
      %103 = vsyncadd [#allocation4], %s102
      %s104 = sshll.u32 [#allocation5], 4
      %s105 = int_to_ptr.vmem [resolvable:$true] %s104
      %110 = dma.vmem_to_hbm [thread:$0]  %s105, 256, %s1, [#allocation4], 128, 128, 8
    $region13: #{tpu_custom_call.1} parent=1 // pred_fallthru
      _
    // Predicated region
    $region14: #{tpu_custom_call.1} parent=1 // pred_check
      _
    $region15: #{tpu_custom_call.1} parent=1 // pred_check_branch
      %112 = sbr.rel (0) target = $region17
    $region16: #{tpu_custom_call.1} parent=1 // pred_region
      %113 = dma.done [#allocation4], 256
    $region17: #{tpu_custom_call.1} parent=1 // pred_fallthru
      _
    %114 = vsyncpa [#allocation3], 1
    %115 = vsyncpa [#allocation4], 1

</llo_original>
